<compile_context>
chip_gen: v7x
topology: tpu7x:2x2x1
jax: 0.10.0
libtpu: 0.0.40
codegen_flags: <defaults>
</compile_context>

<pallas_src>
import functools

import jax
import jax.numpy as jnp
import numpy as np
from jax.experimental import pallas as pl
from jax.experimental.pallas import tpu as pltpu


def _round_up(x, m):
    return (x + m - 1) // m * m


def _cdiv(a, b):
    return -(-a // b)


def _fit_sincos_coeffs():
    """Near-minimax odd/even polynomial coefficients (float64 fit, done once at
    import time) for sin(2*pi*t) and cos(2*pi*t) on the range-reduced interval
    t in [-0.5, 0.5], with the 2*pi folded into the coefficients.

    Fit is done in the well-conditioned variable s = 2*t in [0, 1]:
       sin(pi*s) ~ s * sum_k a_k s^(2k)   (odd,  degree 9)
       cos(pi*s) ~     sum_k b_k s^(2k)   (even, degree 10)
    then converted back to powers of t. Max error ~1e-5 / ~2e-6, far below the
    f32 rounding of the O(30) phase itself.
    """
    n = 4001
    s = 0.5 * (1.0 - np.cos(np.pi * (np.arange(n) + 0.5) / n))  # Chebyshev-ish nodes in (0,1)
    s2 = s * s
    a_mat = np.stack([s * s2 ** k for k in range(5)], axis=1)
    a, *_ = np.linalg.lstsq(a_mat, np.sin(np.pi * s), rcond=None)
    b_mat = np.stack([s2 ** k for k in range(6)], axis=1)
    b, *_ = np.linalg.lstsq(b_mat, np.cos(np.pi * s), rcond=None)
    # substitute s = 2t:  sin(2*pi*t) = t * sum_k (2*4^k*a_k) t^(2k)
    #                     cos(2*pi*t) =     sum_k (4^k*b_k)   t^(2k)
    sin_c = tuple(float(2.0 * (4.0 ** k) * a[k]) for k in range(5))
    cos_c = tuple(float((4.0 ** k) * b[k]) for k in range(6))
    return sin_c, cos_c


_SIN_COEFFS, _COS_COEFFS = _fit_sincos_coeffs()


def _fourier_kernel(x_ref, b_ref, out_ref, *, channels, mapping_size,
                    sin_coeffs, cos_coeffs):
    # x_ref:   (tb, channels)                    -- passthrough + LHS
    # b_ref:   (channels, mapping_size)          -- resident, a few KB
    # out_ref: (tb, channels + 2*mapping_size)   -- fused [x | sin | cos]
    x = x_ref[...].astype(jnp.float32)

    # Tiny contraction (K == channels): unrolled broadcast-FMA on the VPU.
    # (MXU at K=4 would be ~3% utilized; default bf16 MXU precision is also
    #  numerically wrong for the O(30) phase.)
    t = x[:, 0:1] * b_ref[0:1, :]
    for k in range(1, channels):
        t = t + x[:, k:k + 1] * b_ref[k:k + 1, :]

    # sin/cos(2*pi*t) have period 1 in t: reduce to |t| <= 0.5.
    t = t - jnp.round(t)
    t2 = t * t

    # Short near-minimax polynomials on the reduced argument (2*pi folded into
    # the coefficients) -- avoids XLA's generic sin/cos range-reduction and
    # quadrant logic; the VALU is the binding slot on v6e/v7x.
    s = jnp.float32(sin_coeffs[-1])
    for c in sin_coeffs[-2::-1]:
        s = s * t2 + jnp.float32(c)
    sin_v = s * t

    c = jnp.float32(cos_coeffs[-1])
    for k in cos_coeffs[-2::-1]:
        c = c * t2 + jnp.float32(k)
    cos_v = c

    # Three slice stores (no in-kernel concatenate / no (tb, 516) temporary).
    # Layout [x | sin | cos] kept to match the module's output exactly.
    out_ref[:, :channels] = x.astype(out_ref.dtype)
    out_ref[:, channels:channels + mapping_size] = sin_v.astype(out_ref.dtype)
    out_ref[:, channels + mapping_size:] = cos_v.astype(out_ref.dtype)


@functools.partial(jax.jit, static_argnames=("tile_b",))
def fourier_feature_transform(x, B, *, tile_b=2048):
    """x: [batch, channels] f32, B: [channels, mapping_size] f32.

    Returns [batch, channels + 2*mapping_size] = [x | sin(2*pi*x@B) | cos(2*pi*x@B)].
    """
    batch, channels = x.shape
    c2, mapping_size = B.shape
    assert channels == c2, (
        f"Expected input to have {c2} channels (got {channels} channels)")
    out_width = channels + 2 * mapping_size

    # Large tiles amortize the per-step overhead, but cap the tile so the grid
    # has >= 2 steps whenever the batch allows it (keeps both v7x TCs busy).
    half = _cdiv(batch, 2)
    tb = int(min(tile_b, _round_up(half, 8)))
    tb = max(8, tb - tb % 8)                      # sublane-aligned tile
    grid = (_cdiv(batch, tb),)                    # ragged: boundary block clipped by Pallas

    # VMEM budget derived from the tile: double-buffered out + x tiles, resident
    # B, plus ~2 MiB slack for internal scratch.
    vmem_bytes = int(2 * tb * (out_width + channels) * 4
                     + 2 * channels * mapping_size * 4
                     + (2 << 20))

    return pl.pallas_call(
        functools.partial(_fourier_kernel,
                          channels=channels,
                          mapping_size=mapping_size,
                          sin_coeffs=_SIN_COEFFS,
                          cos_coeffs=_COS_COEFFS),
        out_shape=jax.ShapeDtypeStruct((batch, out_width), x.dtype),
        grid_spec=pltpu.PrefetchScalarGridSpec(
            num_scalar_prefetch=0,
            grid=grid,
            in_specs=[
                pl.BlockSpec((tb, channels), lambda i: (i, 0)),
                # B is tiny; same (full) block every step -> effectively resident.
                pl.BlockSpec((channels, mapping_size), lambda i: (0, 0)),
            ],
            out_specs=pl.BlockSpec((tb, out_width), lambda i: (i, 0)),
        ),
        compiler_params=pltpu.CompilerParams(
            # Single independent batch axis -> megacore / 2-TC friendly.
            dimension_semantics=("parallel",),
            vmem_limit_bytes=vmem_bytes,
        ),
    )(x, B)


def make_B(key, num_input_channels, mapping_size, scale):
    """Deterministic replica of the module's __init__: B = randn * scale,
    rows sorted by ascending L2 norm."""
    B = jax.random.normal(key, (num_input_channels, mapping_size),
                          dtype=jnp.float32) * scale
    norms = jnp.linalg.norm(B, axis=1)
    order = jnp.argsort(norms)
    return B[order]


if __name__ == "__main__":
    num_input_channels = 4
    mapping_size = 256
    scale = 10.0

    key = jax.random.PRNGKey(0)
    k_b, k_x = jax.random.split(key)
    B = make_B(k_b, num_input_channels, mapping_size, scale)

    # batch=6: single padded boundary block; batch=333: 2-step grid + ragged tail.
    for batch in (6, 333):
        kx = jax.random.fold_in(k_x, batch)
        x = jax.random.normal(kx, (batch, num_input_channels), dtype=jnp.float32)

        out = jax.block_until_ready(fourier_feature_transform(x, B))
        assert out.shape == (batch, num_input_channels + 2 * mapping_size), out.shape

        # Float64 reference.  The kernel range-reduces before the polynomial,
        # so the dominant error is the f32 rounding of the O(30) phase (~2e-5),
        # well within the 1e-3 tolerance.
        x64 = np.asarray(x, dtype=np.float64)
        B64 = np.asarray(B, dtype=np.float64)
        t = x64 @ B64
        ref = np.concatenate(
            [x64, np.sin(2.0 * np.pi * t), np.cos(2.0 * np.pi * t)], axis=1)
        np.testing.assert_allclose(np.asarray(out), ref, atol=1e-3, rtol=1e-3)

    print("KERNEL_OK")
</pallas_src>

<mosaic_0001>
module attributes {stable_mosaic.version = 11 : i64} {
  func.func @_fourier_kernel(%arg0: i32, %arg1: memref<8x4xf32, #tpu.memory_space<vmem>>, %arg2: memref<4x256xf32, #tpu.memory_space<vmem>>, %arg3: memref<8x516xf32, #tpu.memory_space<vmem>>) attributes {dimension_semantics = [#tpu.dimension_semantics<parallel>], iteration_bounds = array<i64: 1>, scalar_prefetch = 0 : i64, scratch_operands = 0 : i64, tpu.core_type = #tpu.core_type<tc>, window_params = [{transform_indices = @transform_0, window_bounds = array<i64: 8, 4>}, {pipeline_mode = #tpu.pipeline_mode<synchronous>, transform_indices = @transform_1, window_bounds = array<i64: 4, 256>}, {transform_indices = @transform_2, window_bounds = array<i64: 8, 516>}]} {
    %c0 = arith.constant 0 : index
    %c0_0 = arith.constant 0 : index
    %0 = vector.load %arg1[%c0, %c0_0] : memref<8x4xf32, #tpu.memory_space<vmem>>, vector<8x4xf32>
    %1 = vector.extract_strided_slice %0 {offsets = [0, 0], sizes = [8, 1], strides = [1, 1]} : vector<8x4xf32> to vector<8x1xf32>
    %c0_1 = arith.constant 0 : index
    %c0_2 = arith.constant 0 : index
    %2 = vector.load %arg2[%c0_1, %c0_2] : memref<4x256xf32, #tpu.memory_space<vmem>>, vector<1x256xf32>
    %3 = vector.broadcast %1 : vector<8x1xf32> to vector<8x256xf32>
    %4 = vector.broadcast %2 : vector<1x256xf32> to vector<8x256xf32>
    %5 = arith.mulf %3, %4 : vector<8x256xf32>
    %6 = vector.extract_strided_slice %0 {offsets = [0, 1], sizes = [8, 1], strides = [1, 1]} : vector<8x4xf32> to vector<8x1xf32>
    %c1 = arith.constant 1 : index
    %c0_3 = arith.constant 0 : index
    %7 = vector.load %arg2[%c1, %c0_3] : memref<4x256xf32, #tpu.memory_space<vmem>>, vector<1x256xf32>
    %8 = vector.broadcast %6 : vector<8x1xf32> to vector<8x256xf32>
    %9 = vector.broadcast %7 : vector<1x256xf32> to vector<8x256xf32>
    %10 = arith.mulf %8, %9 : vector<8x256xf32>
    %11 = arith.addf %5, %10 : vector<8x256xf32>
    %12 = vector.extract_strided_slice %0 {offsets = [0, 2], sizes = [8, 1], strides = [1, 1]} : vector<8x4xf32> to vector<8x1xf32>
    %c2 = arith.constant 2 : index
    %c0_4 = arith.constant 0 : index
    %13 = vector.load %arg2[%c2, %c0_4] : memref<4x256xf32, #tpu.memory_space<vmem>>, vector<1x256xf32>
    %14 = vector.broadcast %12 : vector<8x1xf32> to vector<8x256xf32>
    %15 = vector.broadcast %13 : vector<1x256xf32> to vector<8x256xf32>
    %16 = arith.mulf %14, %15 : vector<8x256xf32>
    %17 = arith.addf %11, %16 : vector<8x256xf32>
    %18 = vector.extract_strided_slice %0 {offsets = [0, 3], sizes = [8, 1], strides = [1, 1]} : vector<8x4xf32> to vector<8x1xf32>
    %c3 = arith.constant 3 : index
    %c0_5 = arith.constant 0 : index
    %19 = vector.load %arg2[%c3, %c0_5] : memref<4x256xf32, #tpu.memory_space<vmem>>, vector<1x256xf32>
    %20 = vector.broadcast %18 : vector<8x1xf32> to vector<8x256xf32>
    %21 = vector.broadcast %19 : vector<1x256xf32> to vector<8x256xf32>
    %22 = arith.mulf %20, %21 : vector<8x256xf32>
    %23 = arith.addf %17, %22 : vector<8x256xf32>
    %24 = math.roundeven %23 : vector<8x256xf32>
    %25 = arith.subf %23, %24 : vector<8x256xf32>
    %26 = arith.mulf %25, %25 : vector<8x256xf32>
    %cst = arith.constant 32.8945313 : f32
    %27 = vector.broadcast %cst : f32 to vector<8x256xf32>
    %28 = arith.mulf %27, %26 : vector<8x256xf32>
    %cst_6 = arith.constant -7.454510e+01 : f32
    %29 = vector.broadcast %cst_6 : f32 to vector<8x256xf32>
    %30 = arith.addf %28, %29 : vector<8x256xf32>
    %31 = arith.mulf %30, %26 : vector<8x256xf32>
    %cst_7 = arith.constant 81.3803711 : f32
    %32 = vector.broadcast %cst_7 : f32 to vector<8x256xf32>
    %33 = arith.addf %31, %32 : vector<8x256xf32>
    %34 = arith.mulf %33, %26 : vector<8x256xf32>
    %cst_8 = arith.constant -41.3322716 : f32
    %35 = vector.broadcast %cst_8 : f32 to vector<8x256xf32>
    %36 = arith.addf %34, %35 : vector<8x256xf32>
    %37 = arith.mulf %36, %26 : vector<8x256xf32>
    %cst_9 = arith.constant 6.283080e+00 : f32
    %38 = vector.broadcast %cst_9 : f32 to vector<8x256xf32>
    %39 = arith.addf %37, %38 : vector<8x256xf32>
    %40 = arith.mulf %39, %25 : vector<8x256xf32>
    %cst_10 = arith.constant -21.1582279 : f32
    %41 = vector.broadcast %cst_10 : f32 to vector<8x256xf32>
    %42 = arith.mulf %41, %26 : vector<8x256xf32>
    %cst_11 = arith.constant 58.84795 : f32
    %43 = vector.broadcast %cst_11 : f32 to vector<8x256xf32>
    %44 = arith.addf %42, %43 : vector<8x256xf32>
    %45 = arith.mulf %44, %26 : vector<8x256xf32>
    %cst_12 = arith.constant -85.2851715 : f32
    %46 = vector.broadcast %cst_12 : f32 to vector<8x256xf32>
    %47 = arith.addf %45, %46 : vector<8x256xf32>
    %48 = arith.mulf %47, %26 : vector<8x256xf32>
    %cst_13 = arith.constant 64.9300156 : f32
    %49 = vector.broadcast %cst_13 : f32 to vector<8x256xf32>
    %50 = arith.addf %48, %49 : vector<8x256xf32>
    %51 = arith.mulf %50, %26 : vector<8x256xf32>
    %cst_14 = arith.constant -19.7390327 : f32
    %52 = vector.broadcast %cst_14 : f32 to vector<8x256xf32>
    %53 = arith.addf %51, %52 : vector<8x256xf32>
    %54 = arith.mulf %53, %26 : vector<8x256xf32>
    %cst_15 = arith.constant 0.999999642 : f32
    %55 = vector.broadcast %cst_15 : f32 to vector<8x256xf32>
    %56 = arith.addf %54, %55 : vector<8x256xf32>
    %c0_16 = arith.constant 0 : index
    %c0_17 = arith.constant 0 : index
    %57 = vector.load %arg3[%c0_16, %c0_17] : memref<8x516xf32, #tpu.memory_space<vmem>>, vector<8x4xf32>
    tpu.vector_store %arg3[%c0_16, %c0_17], %0 {strides = array<i32>} : memref<8x516xf32, #tpu.memory_space<vmem>>, vector<8x4xf32>,
    %c0_18 = arith.constant 0 : index
    %c4 = arith.constant 4 : index
    %58 = vector.load %arg3[%c0_18, %c4] : memref<8x516xf32, #tpu.memory_space<vmem>>, vector<8x256xf32>
    tpu.vector_store %arg3[%c0_18, %c4], %40 {strides = array<i32>} : memref<8x516xf32, #tpu.memory_space<vmem>>, vector<8x256xf32>,
    %c0_19 = arith.constant 0 : index
    %c260 = arith.constant 260 : index
    %59 = vector.load %arg3[%c0_19, %c260] : memref<8x516xf32, #tpu.memory_space<vmem>>, vector<8x256xf32>
    tpu.vector_store %arg3[%c0_19, %c260], %56 {strides = array<i32>} : memref<8x516xf32, #tpu.memory_space<vmem>>, vector<8x256xf32>,
    return
  }
  func.func @transform_0(%arg0: i32) -> (i32, i32) {
    %c0_i32 = arith.constant 0 : i32
    %c0_i32_0 = arith.constant 0 : i32
    return %arg0, %c0_i32 : i32, i32
  }
  func.func @transform_1(%arg0: i32) -> (i32, i32) {
    %c0_i32 = arith.constant 0 : i32
    %c0_i32_0 = arith.constant 0 : i32
    %c0_i32_1 = arith.constant 0 : i32
    return %c0_i32, %c0_i32_0 : i32, i32
  }
  func.func @transform_2(%arg0: i32) -> (i32, i32) {
    %c0_i32 = arith.constant 0 : i32
    %c0_i32_0 = arith.constant 0 : i32
    return %arg0, %c0_i32 : i32, i32
  }
}

</mosaic_0001>

<llo_original>
// kernel: fourier_feature_transform.1
$region0: #{fourier_feature_transform.1}
  #allocation0 [shape = 'u32[]', space=smem, size = 0x4, offset = 0x4, fixed_abs, tag = 'smem constant byte address 0x4 - core index']
  #allocation1 [shape = 'u32[144,128]{1,0:T(1,128)}', space=vmem, size = 0x12000, scoped, tag = 'internal scratch']
  %s0 = inlined_call_operand.vmem [shape: f32[6,4], index: 0, kind: input, shape index: {}]
  %s1 = inlined_call_operand.vmem [shape: f32[4,256], index: 1, kind: input, shape index: {}]
  %s2 = inlined_call_operand.hbm [shape: f32[6,516], index: 2, kind: output, shape index: {}]
  %s3 = sld [smem:[#allocation0]]
  $region18: #{fourier_feature_transform.1} parent=0
    _
  %s5 = ssub.s32 1, %s3
  %s6 = scalar_select 0, %s5, %s3
  $region1: #{fourier_feature_transform.1} parent=0
    #allocation2 [shape = 'u8[20480]{0}', space=vmem, size = 0x5000, scoped, tag = 'output window, operand 0, single buffered']
    #allocation3 [shape = 's32[1]{0}', space=sflag, size = 0x4, scoped, tag = 'scoped memory for fourier_feature_transform.1']
    %7 = vsyncpa [#allocation3], 0
    // Predicated region
    $region2: #{fourier_feature_transform.1} parent=1 // pred_check
      _
    $region3: #{fourier_feature_transform.1} parent=1 // pred_check_branch
      %9 = sbr.rel (0) target = $region5
    $region4: #{fourier_feature_transform.1} parent=1 // pred_region
      _
    $region5: #{fourier_feature_transform.1} parent=1 // pred_fallthru
      _
    // Predicated region
    $region6: #{fourier_feature_transform.1} parent=1 // pred_check
      _
    $region7: #{fourier_feature_transform.1} parent=1 // pred_check_branch
      %11 = sbr.rel (0) target = $region9
    $region8: #{fourier_feature_transform.1} parent=1 // pred_region
      _
    $region9: #{fourier_feature_transform.1} parent=1 // pred_fallthru
      _
    %v12 = vld [vmem:[%s0] sm:$0xff]
    %v13 = vld [vmem:[%s1] ss:$4 sm:$0x3]
    %15 = vset.pattern.permute.xlu0 0
    %16 = vperm.xlu0 %15, %v12
    %v17 = vpop.permute.xlu0 %16
    %v20 = vlaneseq
    %v21 = vshrl.u32 %v20, 7
    %v22 = vsub.s32 0, %v21
    %v23 = vrot.slane %v13, %v22
    %v24 = vlaneseq
    %v25 = vshrl.u32 %v24, 7
    %v26 = vsub.s32 1, %v25
    %v27 = vrot.slane %v13, %v26
    %v30 = vmul.f32 %v17, %v23
    %v31 = vmul.f32 %v17, %v27
    %s32 = scalar_lea.vmem %s1, 1
    %v33 = vld [vmem:[%s32] ss:$4 sm:$0x3]
    %34 = vset.pattern.permute.xlu0 1
    %35 = vperm.xlu0 %34, %v12
    %v36 = vpop.permute.xlu0 %35
    %v39 = vlaneseq
    %v40 = vshrl.u32 %v39, 7
    %v41 = vsub.s32 0, %v40
    %v42 = vrot.slane %v33, %v41
    %v43 = vlaneseq
    %v44 = vshrl.u32 %v43, 7
    %v45 = vsub.s32 1, %v44
    %v46 = vrot.slane %v33, %v45
    %v49 = vmul.f32 %v36, %v42
    %v50 = vmul.f32 %v36, %v46
    %v51 = vadd.f32 %v30, %v49
    %v52 = vadd.f32 %v31, %v50
    %s53 = scalar_lea.vmem %s1, 2
    %v54 = vld [vmem:[%s53] ss:$4 sm:$0x3]
    %55 = vset.pattern.permute.xlu0 2
    %56 = vperm.xlu0 %55, %v12
    %v57 = vpop.permute.xlu0 %56
    %v60 = vlaneseq
    %v61 = vshrl.u32 %v60, 7
    %v62 = vsub.s32 0, %v61
    %v63 = vrot.slane %v54, %v62
    %v64 = vlaneseq
    %v65 = vshrl.u32 %v64, 7
    %v66 = vsub.s32 1, %v65
    %v67 = vrot.slane %v54, %v66
    %v70 = vmul.f32 %v57, %v63
    %v71 = vmul.f32 %v57, %v67
    %v72 = vadd.f32 %v51, %v70
    %v73 = vadd.f32 %v52, %v71
    %s74 = scalar_lea.vmem %s1, 3
    %v75 = vld [vmem:[%s74] ss:$4 sm:$0x3]
    %76 = vset.pattern.permute.xlu0 3
    %77 = vperm.xlu0 %76, %v12
    %v78 = vpop.permute.xlu0 %77
    %v81 = vlaneseq
    %v82 = vshrl.u32 %v81, 7
    %v83 = vsub.s32 0, %v82
    %v84 = vrot.slane %v75, %v83
    %v85 = vlaneseq
    %v86 = vshrl.u32 %v85, 7
    %v87 = vsub.s32 1, %v86
    %v88 = vrot.slane %v75, %v87
    %v91 = vmul.f32 %v78, %v84
    %v92 = vmul.f32 %v78, %v88
    %v93 = vadd.f32 %v72, %v91
    %v94 = vadd.f32 %v73, %v92
    %v95 = vround.ne.pseudo %v93
    %v96 = vround.ne.pseudo %v94
    %v97 = vsub.f32 %v93, %v95
    %v98 = vsub.f32 %v94, %v96
    %v99 = vmul.f32 %v97, %v97
    %v100 = vmul.f32 %v98, %v98
    %v101 = vmul.f32 %v99, 32.89453
    %v102 = vmul.f32 %v100, 32.89453
    %v103 = vadd.f32 %v101, -74.5451
    %v104 = vadd.f32 %v102, -74.5451
    %v105 = vmul.f32 %v103, %v99
    %v106 = vmul.f32 %v104, %v100
    %v107 = vadd.f32 %v105, 81.38037
    %v108 = vadd.f32 %v106, 81.38037
    %v109 = vmul.f32 %v107, %v99
    %v110 = vmul.f32 %v108, %v100
    %v111 = vadd.f32 %v109, -41.33227
    %v112 = vadd.f32 %v110, -41.33227
    %v113 = vmul.f32 %v111, %v99
    %v114 = vmul.f32 %v112, %v100
    %v115 = vadd.f32 %v113, 6.28308
    %v116 = vadd.f32 %v114, 6.28308
    %v117 = vmul.f32 %v115, %v97
    %v118 = vmul.f32 %v116, %v98
    %v119 = vmul.f32 %v99, -21.158228
    %v120 = vmul.f32 %v100, -21.158228
    %v121 = vadd.f32 %v119, 58.84795
    %v122 = vadd.f32 %v120, 58.84795
    %v123 = vmul.f32 %v121, %v99
    %v124 = vmul.f32 %v122, %v100
    %v125 = vadd.f32 %v123, -85.28517
    %v126 = vadd.f32 %v124, -85.28517
    %v127 = vmul.f32 %v125, %v99
    %v128 = vmul.f32 %v126, %v100
    %v129 = vadd.f32 %v127, 64.930016
    %v130 = vadd.f32 %v128, 64.930016
    %v131 = vmul.f32 %v129, %v99
    %v132 = vmul.f32 %v130, %v100
    %v133 = vadd.f32 %v131, -19.739033
    %v134 = vadd.f32 %v132, -19.739033
    %v135 = vmul.f32 %v133, %v99
    %v136 = vmul.f32 %v134, %v100
    %v137 = vadd.f32 %v135, 0.99999964
    %v138 = vadd.f32 %v136, 0.99999964
    %vm139 = vcmask 31744
    %140 = vst.msk [vmem:[#allocation2] sm:$0xff] %vm139, %v12
    %143 = vrot.lane.b32.xlu0 %v117, 4
    %v144 = vpop.permute.xlu0 %143
    %145 = vrot.lane.b32.xlu0 %v118, 4
    %v146 = vpop.permute.xlu0 %145
    %v147 = vsel %vm139, %v144, %v146
    %vm151 = vcmask 1047584
    %152 = vst.msk [vmem:[#allocation2] sm:$0xff] %vm151, %v144
    %153 = vst [vmem:[#allocation2 + $0x8] sm:$0xff] %v147
    %154 = vst.msk [vmem:[#allocation2 + $0x10] sm:$0xff] %vm139, %v146
    %157 = vrot.lane.b32.xlu0 %v137, 4
    %v158 = vpop.permute.xlu0 %157
    %159 = vrot.lane.b32.xlu0 %v138, 4
    %v160 = vpop.permute.xlu0 %159
    %v161 = vsel %vm139, %v158, %v160
    %165 = vst.msk [vmem:[#allocation2 + $0x10] sm:$0xff] %vm151, %v158
    %166 = vst [vmem:[#allocation2 + $0x18] sm:$0xff] %v161
    %167 = vst.msk [vmem:[#allocation2 + $0x20] sm:$0xff] %vm139, %v160
    // Predicated region
    $region10: #{fourier_feature_transform.1} parent=1 // pred_check
      _
    $region11: #{fourier_feature_transform.1} parent=1 // pred_check_branch
      %169 = sbr.rel (0) target = $region13
    $region12: #{fourier_feature_transform.1} parent=1 // pred_region
      %s171 = ssub.s32 640, 640
      %172 = vsyncadd [#allocation3], %s171
      %s174 = sshll.u32 [#allocation2], 4
      %s175 = int_to_ptr.vmem [resolvable:$true] %s174
      %177 = dma.vmem_to_hbm [thread:$0]  %s175, 640, %s2, [#allocation3]
    $region13: #{fourier_feature_transform.1} parent=1 // pred_fallthru
      _
    // Predicated region
    $region14: #{fourier_feature_transform.1} parent=1 // pred_check
      _
    $region15: #{fourier_feature_transform.1} parent=1 // pred_check_branch
      %179 = sbr.rel (0) target = $region17
    $region16: #{fourier_feature_transform.1} parent=1 // pred_region
      %180 = dma.done [#allocation3], 640
    $region17: #{fourier_feature_transform.1} parent=1 // pred_fallthru
      _
    %181 = vsyncpa [#allocation3], 1

</llo_original>
